<compile_context>
chip_gen: v7x
topology: tpu7x:2x2x1
jax: 0.10.0
libtpu: 0.0.40
codegen_flags: <defaults>
</compile_context>

<pallas_src>
import functools

import jax
import jax.numpy as jnp
from jax.experimental import pallas as pl
from jax.experimental.pallas import tpu as pltpu


def _round_up(v, m):
    return ((v + m - 1) // m) * m


def atom_encoder_kernel(x_ref, emb_ref, w_full_ref, out_ref, *, offsets, num_cat):
    tile_n = x_ref.shape[0]
    total_cat = emb_ref.shape[0]

    # --- dense path: whole tile, no unaligned column slices -------------------
    # w_full has zero rows at the categorical columns, so those columns of x
    # (integer indices stored as float) contribute exactly 0 here.
    out = jnp.dot(x_ref[...], w_full_ref[...], preferred_element_type=jnp.float32)

    # --- categorical embeddings: disjoint one-hot ORs -> one small MXU matmul -
    # Slice starts at lane 0 and is tiny ([tile, num_cat]); lane-aligned.
    cat_idx = x_ref[:, 0:num_cat].astype(jnp.int32)
    col_ids = jax.lax.broadcasted_iota(jnp.int32, (tile_n, total_cat), 1)
    hot = col_ids == (cat_idx[:, 0:1] + offsets[0])
    for i in range(1, num_cat):                                     # unrolled at trace time
        hot = hot | (col_ids == (cat_idx[:, i:i + 1] + offsets[i]))  # ranges are disjoint
    multihot = hot.astype(jnp.float32)

    # sum_i Embedding_i(x[:, i]) @ W_le + bias  ==  multihot @ emb_folded
    # (effective bias is pre-folded into emb_folded as bias/num_cat per row).
    out = out + jnp.dot(multihot, emb_ref[...], preferred_element_type=jnp.float32)

    out_ref[...] = out.astype(out_ref.dtype)


def atom_encoder_forward(x, params, cat_dims, num_scalar, lm_dim, emb_dim,
                         *, tile_n=1024, min_grid_steps=4):
    """Row-tiled Pallas forward.

    tile_n ~1024-2048 is on the flat part of the HBM-roofline curve on
    v5e/v6e/v7x; min_grid_steps>=4 keeps both v7x TensorCores busy.
    """
    num_cat = len(cat_dims)
    assert num_cat >= 1, "module defines at least one categorical embedding"
    assert num_scalar > 0, "lm_embedding_layer only exists when num_scalar > 0"
    n, f = x.shape
    assert f == num_cat + num_scalar + lm_dim
    assert n > 0

    offsets, acc = [], 0
    for d in cat_dims:
        offsets.append(acc)
        acc += d
    offsets = tuple(offsets)
    total_cat = acc

    # ---- fold parameters (all tiny; done once per call in plain XLA) --------
    w_lm_emb = params["w_lm_emb"].astype(jnp.float32)            # [emb, emb]
    # Effective bias of the whole forward:  b_lin @ W_le + b_lm   -> [1, emb]
    bias_eff = (params["b_lin"].astype(jnp.float32) @ w_lm_emb
                + params["b_lm"].astype(jnp.float32))
    # Concatenated embedding table folded through W_le, with bias folded in
    # (bias/num_cat per row; exactly num_cat rows are hot per atom when the
    #  categorical indices are in range, as the module contract requires).
    emb_folded = (params["emb_table"].astype(jnp.float32) @ w_lm_emb
                  + bias_eff / float(num_cat))                    # [total_cat, emb]
    # Single dense weight over the full feature axis: zero rows at the
    # categorical columns, (W_lin @ W_le) at the scalar columns, W_ll at the
    # lm columns.  Lets the kernel matmul the whole (lane-aligned) x tile.
    w_full = jnp.zeros((f, emb_dim), jnp.float32)
    w_full = w_full.at[num_cat:num_cat + num_scalar].set(
        params["w_lin"].astype(jnp.float32) @ w_lm_emb)
    w_full = w_full.at[num_cat + num_scalar:].set(
        params["w_lm_lm"].astype(jnp.float32))

    # ---- tile size -----------------------------------------------------------
    # Multiple of 8 (sublane), no larger than (rounded-up) N, and small enough
    # that the grid has >= min_grid_steps steps (v7x megacore split).
    tile_n = min(tile_n, _round_up(n, 8))
    if min_grid_steps > 1:
        tile_n = min(tile_n, _round_up(pl.cdiv(n, min_grid_steps), 8))
    tile_n = max(8, _round_up(tile_n, 8))
    grid = (pl.cdiv(n, tile_n),)

    kernel = functools.partial(atom_encoder_kernel, offsets=offsets, num_cat=num_cat)

    def resident(arr):
        # Parameter stays VMEM-resident: full block, same block every grid step.
        return pl.BlockSpec(arr.shape, lambda i: (0, 0))

    cost = pl.CostEstimate(
        flops=2 * n * f * emb_dim + 2 * n * total_cat * emb_dim,
        transcendentals=0,
        bytes_accessed=n * f * 4 + n * emb_dim * 4
        + (total_cat + f) * emb_dim * 4,
    )

    # NOTE: if a profile ever shows exposed per-step DMA, bump only the x spec
    # to pipeline_mode=pl.Buffered(3); the resident params are left default.
    return pl.pallas_call(
        kernel,
        out_shape=jax.ShapeDtypeStruct((n, emb_dim), jnp.float32),
        grid=grid,
        in_specs=[pl.BlockSpec((tile_n, f), lambda i: (i, 0)),   # x: tiled over rows
                  resident(emb_folded),
                  resident(w_full)],
        out_specs=pl.BlockSpec((tile_n, emb_dim), lambda i: (i, 0)),
        compiler_params=pltpu.CompilerParams(
            dimension_semantics=("parallel",),          # shard rows across TCs (v7x)
            vmem_limit_bytes=40 * 1024 * 1024),         # fits tile_n<=2048 dbl-buffered
        cost_estimate=cost,
    )(x, emb_folded, w_full)


def make_params(key, cat_dims, num_scalar, lm_dim, emb_dim):
    """Deterministic synthetic parameter init (mirrors shapes in __init__)."""
    keys = jax.random.split(key, 6)
    total_cat = sum(cat_dims)
    bound = (6.0 / (total_cat + emb_dim)) ** 0.5
    emb_table = jax.random.uniform(keys[0], (total_cat, emb_dim),
                                   minval=-bound, maxval=bound, dtype=jnp.float32)
    w_lin = jax.random.normal(keys[1], (num_scalar, emb_dim), jnp.float32) * 0.05
    b_lin = jax.random.normal(keys[2], (1, emb_dim), jnp.float32) * 0.05
    # lm_embedding_layer: in = emb_dim + lm_dim -> emb_dim ; split by concat order
    w_lm_emb = jax.random.normal(keys[3], (emb_dim, emb_dim), jnp.float32) * 0.05
    w_lm_lm = jax.random.normal(keys[4], (lm_dim, emb_dim), jnp.float32) * 0.02
    b_lm = jax.random.normal(keys[5], (1, emb_dim), jnp.float32) * 0.05
    return {
        "emb_table": emb_table,
        "w_lin": w_lin, "b_lin": b_lin,
        "w_lm_emb": w_lm_emb, "w_lm_lm": w_lm_lm, "b_lm": b_lm,
    }


def reference_forward(x, params, cat_dims, num_scalar, lm_dim, emb_dim):
    """Plain-JAX reference replicating the PyTorch forward."""
    num_cat = len(cat_dims)
    x_embedding = jnp.zeros((x.shape[0], emb_dim), jnp.float32)
    off = 0
    for i, d in enumerate(cat_dims):
        idx = x[:, i].astype(jnp.int32) + off
        x_embedding = x_embedding + jnp.take(params["emb_table"], idx, axis=0)
        off += d
    scalar = x[:, num_cat:num_cat + num_scalar]
    x_embedding = x_embedding + scalar @ params["w_lin"] + params["b_lin"]
    lm = x[:, -lm_dim:]
    return x_embedding @ params["w_lm_emb"] + lm @ params["w_lm_lm"] + params["b_lm"]


if __name__ == "__main__":
    # small, module-consistent shapes
    cat_dims = (5, 7, 3)        # feature_dims[0]
    num_scalar = 4              # feature_dims[1]
    lm_dim = 1280               # self.lm_embedding_dim
    emb_dim = 32
    n_atoms = 20                # not a multiple of the tile -> exercises edge masking

    key = jax.random.PRNGKey(0)
    k_par, k_cat, k_sca, k_lm = jax.random.split(key, 4)
    params = make_params(k_par, cat_dims, num_scalar, lm_dim, emb_dim)

    # build x = [cat indices (as float) | scalar feats | lm embedding]
    cat_cols = jnp.stack(
        [jax.random.randint(jax.random.fold_in(k_cat, i), (n_atoms,), 0, d)
         for i, d in enumerate(cat_dims)], axis=1).astype(jnp.float32)
    scalar_cols = jax.random.normal(k_sca, (n_atoms, num_scalar), jnp.float32)
    lm_cols = jax.random.normal(k_lm, (n_atoms, lm_dim), jnp.float32)
    x = jnp.concatenate([cat_cols, scalar_cols, lm_cols], axis=1)

    ref = reference_forward(x, params, cat_dims, num_scalar, lm_dim, emb_dim)

    # default path: tile_n capped so the grid has >=4 steps (megacore-friendly),
    # final tile partially filled -> exercises output masking.
    out = atom_encoder_forward(x, params, cat_dims, num_scalar, lm_dim, emb_dim)
    out = jax.block_until_ready(out)
    assert out.shape == (n_atoms, emb_dim)
    assert jnp.allclose(out, ref, atol=1e-4, rtol=1e-4), "tiled (multi-step) mismatch"

    # single-tile path (grid of 1 step, whole N rounded up into one block)
    out2 = atom_encoder_forward(x, params, cat_dims, num_scalar, lm_dim, emb_dim,
                                min_grid_steps=1)
    out2 = jax.block_until_ready(out2)
    assert jnp.allclose(out2, ref, atol=1e-4, rtol=1e-4), "single-tile mismatch"

    print("KERNEL_OK")
</pallas_src>

<mosaic_0001>
module attributes {stable_mosaic.version = 11 : i64} {
  func.func @atom_encoder_kernel(%arg0: i32, %arg1: memref<8x1287xf32, #tpu.memory_space<vmem>>, %arg2: memref<15x32xf32, #tpu.memory_space<vmem>>, %arg3: memref<1287x32xf32, #tpu.memory_space<vmem>>, %arg4: memref<8x32xf32, #tpu.memory_space<vmem>>) attributes {dimension_semantics = [#tpu.dimension_semantics<parallel>], iteration_bounds = array<i64: 3>, scalar_prefetch = 0 : i64, scratch_operands = 0 : i64, tpu.core_type = #tpu.core_type<tc>, window_params = [{transform_indices = @transform_0, window_bounds = array<i64: 8, 1287>}, {pipeline_mode = #tpu.pipeline_mode<synchronous>, transform_indices = @transform_1, window_bounds = array<i64: 15, 32>}, {pipeline_mode = #tpu.pipeline_mode<synchronous>, transform_indices = @transform_2, window_bounds = array<i64: 1287, 32>}, {transform_indices = @transform_3, window_bounds = array<i64: 8, 32>}]} {
    %c0 = arith.constant 0 : index
    %c0_0 = arith.constant 0 : index
    %0 = vector.load %arg1[%c0, %c0_0] : memref<8x1287xf32, #tpu.memory_space<vmem>>, vector<8x1287xf32>
    %c0_1 = arith.constant 0 : index
    %c0_2 = arith.constant 0 : index
    %1 = vector.load %arg3[%c0_1, %c0_2] : memref<1287x32xf32, #tpu.memory_space<vmem>>, vector<1287x32xf32>
    %cst = arith.constant dense<0.000000e+00> : vector<8x32xf32>
    %2 = tpu.matmul %0, %1, %cst {dimension_numbers = #tpu.dot_dimension_numbers<[1], [0], [0], [1], [0, 0, 1, 1], [], []>} : vector<8x1287xf32>, vector<1287x32xf32>, vector<8x32xf32> -> vector<8x32xf32>
    %c0_3 = arith.constant 0 : index
    %c0_4 = arith.constant 0 : index
    %3 = vector.load %arg1[%c0_3, %c0_4] : memref<8x1287xf32, #tpu.memory_space<vmem>>, vector<8x3xf32>
    %4 = arith.fptosi %3 : vector<8x3xf32> to vector<8x3xi32>
    %5 = tpu.iota {dimensions = array<i32: 1>} : vector<8x15xi32>
    %6 = vector.extract_strided_slice %4 {offsets = [0, 0], sizes = [8, 1], strides = [1, 1]} : vector<8x3xi32> to vector<8x1xi32>
    %c0_i32 = arith.constant 0 : i32
    %7 = vector.broadcast %c0_i32 : i32 to vector<8x1xi32>
    %8 = arith.addi %6, %7 : vector<8x1xi32>
    %9 = vector.broadcast %8 : vector<8x1xi32> to vector<8x15xi32>
    %10 = arith.cmpi eq, %5, %9 : vector<8x15xi32>
    %11 = vector.extract_strided_slice %4 {offsets = [0, 1], sizes = [8, 1], strides = [1, 1]} : vector<8x3xi32> to vector<8x1xi32>
    %c5_i32 = arith.constant 5 : i32
    %12 = vector.broadcast %c5_i32 : i32 to vector<8x1xi32>
    %13 = arith.addi %11, %12 : vector<8x1xi32>
    %14 = vector.broadcast %13 : vector<8x1xi32> to vector<8x15xi32>
    %15 = arith.cmpi eq, %5, %14 : vector<8x15xi32>
    %16 = arith.ori %10, %15 : vector<8x15xi1>
    %17 = vector.extract_strided_slice %4 {offsets = [0, 2], sizes = [8, 1], strides = [1, 1]} : vector<8x3xi32> to vector<8x1xi32>
    %c12_i32 = arith.constant 12 : i32
    %18 = vector.broadcast %c12_i32 : i32 to vector<8x1xi32>
    %19 = arith.addi %17, %18 : vector<8x1xi32>
    %20 = vector.broadcast %19 : vector<8x1xi32> to vector<8x15xi32>
    %21 = arith.cmpi eq, %5, %20 : vector<8x15xi32>
    %22 = arith.ori %16, %21 : vector<8x15xi1>
    %23 = arith.extui %22 : vector<8x15xi1> to vector<8x15xi32>
    %24 = arith.sitofp %23 : vector<8x15xi32> to vector<8x15xf32>
    %c0_5 = arith.constant 0 : index
    %c0_6 = arith.constant 0 : index
    %25 = vector.load %arg2[%c0_5, %c0_6] : memref<15x32xf32, #tpu.memory_space<vmem>>, vector<15x32xf32>
    %cst_7 = arith.constant dense<0.000000e+00> : vector<8x32xf32>
    %26 = tpu.matmul %24, %25, %cst_7 {dimension_numbers = #tpu.dot_dimension_numbers<[1], [0], [0], [1], [0, 0, 1, 1], [], []>} : vector<8x15xf32>, vector<15x32xf32>, vector<8x32xf32> -> vector<8x32xf32>
    %27 = arith.addf %2, %26 : vector<8x32xf32>
    %c0_8 = arith.constant 0 : index
    %c0_9 = arith.constant 0 : index
    %28 = vector.load %arg4[%c0_8, %c0_9] : memref<8x32xf32, #tpu.memory_space<vmem>>, vector<8x32xf32>
    tpu.vector_store %arg4[%c0_8, %c0_9], %27 {strides = array<i32>} : memref<8x32xf32, #tpu.memory_space<vmem>>, vector<8x32xf32>,
    return
  }
  func.func @transform_0(%arg0: i32) -> (i32, i32) {
    %c0_i32 = arith.constant 0 : i32
    %c0_i32_0 = arith.constant 0 : i32
    return %arg0, %c0_i32 : i32, i32
  }
  func.func @transform_1(%arg0: i32) -> (i32, i32) {
    %c0_i32 = arith.constant 0 : i32
    %c0_i32_0 = arith.constant 0 : i32
    %c0_i32_1 = arith.constant 0 : i32
    return %c0_i32, %c0_i32_0 : i32, i32
  }
  func.func @transform_2(%arg0: i32) -> (i32, i32) {
    %c0_i32 = arith.constant 0 : i32
    %c0_i32_0 = arith.constant 0 : i32
    %c0_i32_1 = arith.constant 0 : i32
    return %c0_i32, %c0_i32_0 : i32, i32
  }
  func.func @transform_3(%arg0: i32) -> (i32, i32) {
    %c0_i32 = arith.constant 0 : i32
    %c0_i32_0 = arith.constant 0 : i32
    return %arg0, %c0_i32 : i32, i32
  }
}

</mosaic_0001>

<llo_original>
// kernel: tpu_custom_call.1
$region0: #{tpu_custom_call.1}
  #allocation0 [shape = 'u32[]', space=smem, size = 0x4, offset = 0x4, fixed_abs, tag = 'smem constant byte address 0x4 - core index']
  #allocation1 [shape = 'u32[144,128]{1,0:T(1,128)}', space=vmem, size = 0x12000, scoped, tag = 'internal scratch']
  %s0 = inlined_call_operand.vmem [shape: f32[20,1287], index: 0, kind: input, shape index: {}]
  %s1 = inlined_call_operand.vmem [shape: f32[15,32], index: 1, kind: input, shape index: {}]
  %s2 = inlined_call_operand.vmem [shape: f32[1287,32], index: 2, kind: input, shape index: {}]
  %s3 = inlined_call_operand.hbm [shape: f32[20,32], index: 3, kind: output, shape index: {}]
  %s4 = sld [smem:[#allocation0]]
  $region45: #{tpu_custom_call.1} parent=0
    _
  %s6 = ssub.s32 1, %s4
  %s7 = scalar_select 0, %s6, %s4
  $region1: #{tpu_custom_call.1} parent=0
    #allocation2 [shape = 'u8[8192]{0}', space=vmem, size = 0x2000, scoped, tag = 'output window, operand 0']
    #allocation3 [shape = 's32[2]{0}', space=sflag, size = 0x8, scoped, tag = 'scoped memory for tpu_custom_call.1']
    %8 = vsyncpa [#allocation3], 0
    %s9 = scalar_lea.sflag [#allocation3], 1
    %10 = vsyncpa %s9, 0
    loop: start=0, step=1, limit=5
    $region2: #{tpu_custom_call.1} parent=1 // loop_pre_header
      _
    $region3: #{tpu_custom_call.1} parent=1 // loop_header
      %s12 = sphi 0, %s16
      %p13 = scmp.ge.s32.totalorder %s12, 5
      %s22 = sphi 0, %s24
      %s25 = sphi 0, %s22
      %s26 = sphi 0, %s25
      %s42 = sphi 0, %s26
      %s46 = sphi 0, %s46
      %s48 = sphi 0, %s46
      %s49 = sphi 0, %s48
      %s63 = sphi 0, %s49
      %s67 = sphi 0, %s67
      %s69 = sphi 0, %s67
      %s70 = sphi 0, %s69
      %s84 = sphi 0, %s70
      %s90 = sphi 0, %s92
      %s93 = sphi 0, %s90
      %s94 = sphi 0, %s93
      %s110 = sphi 0, %s94
    $region4: #{tpu_custom_call.1} parent=1 // loop_header_branch
      %15 = sbr.rel (%p13) target = $region8
    $region5: #{tpu_custom_call.1} parent=1 // loop_body
      %s17 = ssub.s32 %s12, 1
      %s18 = ssub.s32 %s12, 2
      %s19 = sadd.s32 %s12, 1
      %s20 = ssub.s32 %s12, %s19
      %p21 = scmp.eq.s32.totalorder %s20, 0
      %s23 = sadd.s32 %s22, 1
      %s24 = scalar_select %p21, %s22, %s23
      %p27 = pneg %p21
      %p28 = scmp.eq.s32.totalorder %s12, 2
      %p29 = por %p27, %p28
      %p30 = scmp.ne.s32.totalorder %s22, %s25
      %p31 = scmp.eq.s32.totalorder %s12, 0
      %p32 = por %p30, %p31
      %p33 = scmp.ne.s32.totalorder %s22, %s25
      %p34 = scmp.eq.s32.totalorder %s17, 2
      %p35 = por %p33, %p34
      %p36 = scmp.ne.s32.totalorder %s25, %s26
      %p37 = scmp.eq.s32.totalorder %s17, 0
      %p38 = por %p36, %p37
      %p39 = scmp.ne.s32.totalorder %s25, %s26
      %p40 = scmp.eq.s32.totalorder %s18, 2
      %p41 = por %p39, %p40
      %p43 = scmp.ne.s32.totalorder %s26, %s42
      %p44 = scmp.eq.s32.totalorder %s18, 0
      %p45 = por %p43, %p44
      %s47 = sadd.s32 %s46, 1
      %p50 = scmp.eq.s32.totalorder %s12, 2
      %p51 = scmp.ne.s32.totalorder %s46, %s48
      %p52 = scmp.eq.s32.totalorder %s12, 0
      %p53 = por %p51, %p52
      %p54 = scmp.ne.s32.totalorder %s46, %s48
      %p55 = scmp.eq.s32.totalorder %s17, 2
      %p56 = por %p54, %p55
      %p57 = scmp.ne.s32.totalorder %s48, %s49
      %p58 = scmp.eq.s32.totalorder %s17, 0
      %p59 = por %p57, %p58
      %p60 = scmp.ne.s32.totalorder %s48, %s49
      %p61 = scmp.eq.s32.totalorder %s18, 2
      %p62 = por %p60, %p61
      %p64 = scmp.ne.s32.totalorder %s49, %s63
      %p65 = scmp.eq.s32.totalorder %s18, 0
      %p66 = por %p64, %p65
      %s68 = sadd.s32 %s67, 1
      %p71 = scmp.eq.s32.totalorder %s12, 2
      %p72 = scmp.ne.s32.totalorder %s67, %s69
      %p73 = scmp.eq.s32.totalorder %s12, 0
      %p74 = por %p72, %p73
      %p75 = scmp.ne.s32.totalorder %s67, %s69
      %p76 = scmp.eq.s32.totalorder %s17, 2
      %p77 = por %p75, %p76
      %p78 = scmp.ne.s32.totalorder %s69, %s70
      %p79 = scmp.eq.s32.totalorder %s17, 0
      %p80 = por %p78, %p79
      %p81 = scmp.ne.s32.totalorder %s69, %s70
      %p82 = scmp.eq.s32.totalorder %s18, 2
      %p83 = por %p81, %p82
      %p85 = scmp.ne.s32.totalorder %s70, %s84
      %p86 = scmp.eq.s32.totalorder %s18, 0
      %p87 = por %p85, %p86
      %s88 = ssub.s32 %s12, %s19
      %p89 = scmp.eq.s32.totalorder %s88, 0
      %s91 = sadd.s32 %s90, 1
      %s92 = scalar_select %p89, %s90, %s91
      %p95 = pneg %p89
      %p96 = scmp.eq.s32.totalorder %s12, 2
      %p97 = por %p95, %p96
      %p98 = scmp.ne.s32.totalorder %s90, %s93
      %p99 = scmp.eq.s32.totalorder %s12, 0
      %p100 = por %p98, %p99
      %p101 = scmp.ne.s32.totalorder %s90, %s93
      %p102 = scmp.eq.s32.totalorder %s17, 2
      %p103 = por %p101, %p102
      %p104 = scmp.ne.s32.totalorder %s93, %s94
      %p105 = scmp.eq.s32.totalorder %s17, 0
      %p106 = por %p104, %p105
      %p107 = scmp.ne.s32.totalorder %s93, %s94
      %p108 = scmp.eq.s32.totalorder %s18, 2
      %p109 = por %p107, %p108
      %p111 = scmp.ne.s32.totalorder %s94, %s110
      %p112 = scmp.eq.s32.totalorder %s18, 0
      %p113 = por %p111, %p112
      %p114 = scmp.le.s32.totalorder 1, %s12
      %p115 = scmp.lt.s32.totalorder %s12, 4
      %p116 = pnand %p114, %p115
      %p117 = pneg %p116
      // Predicated region
      $region9: #{tpu_custom_call.1} parent=5 // pred_check
        _
      $region10: #{tpu_custom_call.1} parent=5 // pred_check_branch
        %119 = sbr.rel (%p116) target = $region12
      $region11: #{tpu_custom_call.1} parent=5 // pred_region
        %s120 = ssub.s32 %s12, 1
        // Predicated region
        $region13: #{tpu_custom_call.1} parent=11 // pred_check
          %p121 = pneg %p59
        $region14: #{tpu_custom_call.1} parent=11 // pred_check_branch
          %123 = sbr.rel (%p121) target = $region16
        $region15: #{tpu_custom_call.1} parent=11 // pred_region
          _
        $region16: #{tpu_custom_call.1} parent=11 // pred_fallthru
          _
        // Predicated region
        $region17: #{tpu_custom_call.1} parent=11 // pred_check
          %p124 = pneg %p80
        $region18: #{tpu_custom_call.1} parent=11 // pred_check_branch
          %126 = sbr.rel (%p124) target = $region20
        $region19: #{tpu_custom_call.1} parent=11 // pred_region
          _
        $region20: #{tpu_custom_call.1} parent=11 // pred_fallthru
          _
      $region12: #{tpu_custom_call.1} parent=5 // pred_fallthru
        _
      %p127 = scmp.lt.s32.totalorder %s12, 3
      // Predicated region
      $region21: #{tpu_custom_call.1} parent=5 // pred_check
        %p128 = pneg %p127
      $region22: #{tpu_custom_call.1} parent=5 // pred_check_branch
        %130 = sbr.rel (%p128) target = $region24
      $region23: #{tpu_custom_call.1} parent=5 // pred_region
        // Predicated region
        $region25: #{tpu_custom_call.1} parent=23 // pred_check
          %p131 = pneg %p32
        $region26: #{tpu_custom_call.1} parent=23 // pred_check_branch
          %133 = sbr.rel (%p131) target = $region28
        $region27: #{tpu_custom_call.1} parent=23 // pred_region
          %p134 = scmp.lt.s32.totalorder %s12, 2
          %s135 = scalar_select %p134, %s12, 2
          %s136 = smul.addr %s135, 11
          %s137 = smul.addr %s136, 8
          %s138 = scalar_lea.vmem %s0, %s137
        $region28: #{tpu_custom_call.1} parent=23 // pred_fallthru
          _
      $region24: #{tpu_custom_call.1} parent=5 // pred_fallthru
        _
      %p139 = scmp.le.s32.totalorder 1, %s12
      %p140 = scmp.lt.s32.totalorder %s12, 4
      %p141 = pnand %p139, %p140
      %p142 = pneg %p141
      // Predicated region
      $region29: #{tpu_custom_call.1} parent=5 // pred_check
        _
      $region30: #{tpu_custom_call.1} parent=5 // pred_check_branch
        %144 = sbr.rel (%p141) target = $region32
      $region31: #{tpu_custom_call.1} parent=5 // pred_region
        %s145 = ssub.s32 %s12, 1
        %p146 = scmp.lt.s32.totalorder %s17, 2
        %s147 = scalar_select %p146, %s17, 2
        %s148 = smul.addr %s147, 11
        %s149 = smul.addr %s148, 8
        %s150 = scalar_lea.vmem %s0, %s149
        %p151 = pneg %p38
        %p152 = pneg %p35
        %p153 = pneg %p59
        %p154 = pneg %p56
        %p155 = pneg %p80
        %p156 = pneg %p77
        %p157 = pneg %p106
        %p158 = pneg %p103
        %s159 = sand.u32 %s93, 1
        %s160 = scalar_lea.sflag [#allocation3], %s159
        %s161 = sand.u32 %s93, 1
        %s162 = smul.addr %s161, 8
        %s163 = scalar_lea.vmem [#allocation2], %s162
        %p164 = scmp.lt.s32.totalorder %s17, 2
        %s165 = scalar_select %p164, %s17, 2
        %s166 = smul.addr %s165, 11
        %s167 = smul.addr %s166, 8
        %s168 = scalar_lea.vmem %s0, %s167
        %v169 = vld [vmem:[%s168] sm:$0xff]
        %v170 = vld [vmem:[%s168 + $0x8] sm:$0xff]
        %v171 = vld [vmem:[%s168 + $0x10] sm:$0xff]
        %v172 = vld [vmem:[%s168 + $0x18] sm:$0xff]
        %v173 = vld [vmem:[%s168 + $0x20] sm:$0xff]
        %v174 = vld [vmem:[%s168 + $0x28] sm:$0xff]
        %v175 = vld [vmem:[%s168 + $0x30] sm:$0xff]
        %v176 = vld [vmem:[%s168 + $0x38] sm:$0xff]
        %v177 = vld [vmem:[%s168 + $0x40] sm:$0xff]
        %v178 = vld [vmem:[%s168 + $0x48] sm:$0xff]
        %v179 = vld [vmem:[%s168 + $0x50] sm:$0xff]
        %v180 = vld [vmem:[%s2] sm:$0xff]
        %v181 = vld [vmem:[%s2 + $0x8] sm:$0xff]
        %v182 = vld [vmem:[%s2 + $0x10] sm:$0xff]
        %v183 = vld [vmem:[%s2 + $0x18] sm:$0xff]
        %v184 = vld [vmem:[%s2 + $0x20] sm:$0xff]
        %v185 = vld [vmem:[%s2 + $0x28] sm:$0xff]
        %v186 = vld [vmem:[%s2 + $0x30] sm:$0xff]
        %v187 = vld [vmem:[%s2 + $0x38] sm:$0xff]
        %v188 = vld [vmem:[%s2 + $0x40] sm:$0xff]
        %v189 = vld [vmem:[%s2 + $0x48] sm:$0xff]
        %v190 = vld [vmem:[%s2 + $0x50] sm:$0xff]
        %v191 = vld [vmem:[%s2 + $0x58] sm:$0xff]
        %v192 = vld [vmem:[%s2 + $0x60] sm:$0xff]
        %v193 = vld [vmem:[%s2 + $0x68] sm:$0xff]
        %v194 = vld [vmem:[%s2 + $0x70] sm:$0xff]
        %v195 = vld [vmem:[%s2 + $0x78] sm:$0xff]
        %v196 = vld [vmem:[%s2 + $0x80] sm:$0xff]
        %v197 = vld [vmem:[%s2 + $0x88] sm:$0xff]
        %v198 = vld [vmem:[%s2 + $0x90] sm:$0xff]
        %v199 = vld [vmem:[%s2 + $0x98] sm:$0xff]
        %v200 = vld [vmem:[%s2 + $0xa0] sm:$0xff]
        %v201 = vld [vmem:[%s2 + $0xa8] sm:$0xff]
        %v202 = vld [vmem:[%s2 + $0xb0] sm:$0xff]
        %v203 = vld [vmem:[%s2 + $0xb8] sm:$0xff]
        %v204 = vld [vmem:[%s2 + $0xc0] sm:$0xff]
        %v205 = vld [vmem:[%s2 + $0xc8] sm:$0xff]
        %v206 = vld [vmem:[%s2 + $0xd0] sm:$0xff]
        %v207 = vld [vmem:[%s2 + $0xd8] sm:$0xff]
        %v208 = vld [vmem:[%s2 + $0xe0] sm:$0xff]
        %v209 = vld [vmem:[%s2 + $0xe8] sm:$0xff]
        %v210 = vld [vmem:[%s2 + $0xf0] sm:$0xff]
        %v211 = vld [vmem:[%s2 + $0xf8] sm:$0xff]
        %v212 = vld [vmem:[%s2 + $0x100] sm:$0xff]
        %v213 = vld [vmem:[%s2 + $0x108] sm:$0xff]
        %v214 = vld [vmem:[%s2 + $0x110] sm:$0xff]
        %v215 = vld [vmem:[%s2 + $0x118] sm:$0xff]
        %v216 = vld [vmem:[%s2 + $0x120] sm:$0xff]
        %v217 = vld [vmem:[%s2 + $0x128] sm:$0xff]
        %v218 = vld [vmem:[%s2 + $0x130] sm:$0xff]
        %v219 = vld [vmem:[%s2 + $0x138] sm:$0xff]
        %v220 = vld [vmem:[%s2 + $0x140] sm:$0xff]
        %v221 = vld [vmem:[%s2 + $0x148] sm:$0xff]
        %v222 = vld [vmem:[%s2 + $0x150] sm:$0xff]
        %v223 = vld [vmem:[%s2 + $0x158] sm:$0xff]
        %v224 = vld [vmem:[%s2 + $0x160] sm:$0xff]
        %v225 = vld [vmem:[%s2 + $0x168] sm:$0xff]
        %v226 = vld [vmem:[%s2 + $0x170] sm:$0xff]
        %v227 = vld [vmem:[%s2 + $0x178] sm:$0xff]
        %v228 = vld [vmem:[%s2 + $0x180] sm:$0xff]
        %v229 = vld [vmem:[%s2 + $0x188] sm:$0xff]
        %v230 = vld [vmem:[%s2 + $0x190] sm:$0xff]
        %v231 = vld [vmem:[%s2 + $0x198] sm:$0xff]
        %v232 = vld [vmem:[%s2 + $0x1a0] sm:$0xff]
        %v233 = vld [vmem:[%s2 + $0x1a8] sm:$0xff]
        %v234 = vld [vmem:[%s2 + $0x1b0] sm:$0xff]
        %v235 = vld [vmem:[%s2 + $0x1b8] sm:$0xff]
        %v236 = vld [vmem:[%s2 + $0x1c0] sm:$0xff]
        %v237 = vld [vmem:[%s2 + $0x1c8] sm:$0xff]
        %v238 = vld [vmem:[%s2 + $0x1d0] sm:$0xff]
        %v239 = vld [vmem:[%s2 + $0x1d8] sm:$0xff]
        %v240 = vld [vmem:[%s2 + $0x1e0] sm:$0xff]
        %v241 = vld [vmem:[%s2 + $0x1e8] sm:$0xff]
        %v242 = vld [vmem:[%s2 + $0x1f0] sm:$0xff]
        %v243 = vld [vmem:[%s2 + $0x1f8] sm:$0xff]
        %v244 = vld [vmem:[%s2 + $0x200] sm:$0xff]
        %v245 = vld [vmem:[%s2 + $0x208] sm:$0xff]
        %v246 = vld [vmem:[%s2 + $0x210] sm:$0xff]
        %v247 = vld [vmem:[%s2 + $0x218] sm:$0xff]
        %v248 = vld [vmem:[%s2 + $0x220] sm:$0xff]
        %v249 = vld [vmem:[%s2 + $0x228] sm:$0xff]
        %v250 = vld [vmem:[%s2 + $0x230] sm:$0xff]
        %v251 = vld [vmem:[%s2 + $0x238] sm:$0xff]
        %v252 = vld [vmem:[%s2 + $0x240] sm:$0xff]
        %v253 = vld [vmem:[%s2 + $0x248] sm:$0xff]
        %v254 = vld [vmem:[%s2 + $0x250] sm:$0xff]
        %v255 = vld [vmem:[%s2 + $0x258] sm:$0xff]
        %v256 = vld [vmem:[%s2 + $0x260] sm:$0xff]
        %v257 = vld [vmem:[%s2 + $0x268] sm:$0xff]
        %v258 = vld [vmem:[%s2 + $0x270] sm:$0xff]
        %v259 = vld [vmem:[%s2 + $0x278] sm:$0xff]
        %v260 = vld [vmem:[%s2 + $0x280] sm:$0xff]
        %v261 = vld [vmem:[%s2 + $0x288] sm:$0xff]
        %v262 = vld [vmem:[%s2 + $0x290] sm:$0xff]
        %v263 = vld [vmem:[%s2 + $0x298] sm:$0xff]
        %v264 = vld [vmem:[%s2 + $0x2a0] sm:$0xff]
        %v265 = vld [vmem:[%s2 + $0x2a8] sm:$0xff]
        %v266 = vld [vmem:[%s2 + $0x2b0] sm:$0xff]
        %v267 = vld [vmem:[%s2 + $0x2b8] sm:$0xff]
        %v268 = vld [vmem:[%s2 + $0x2c0] sm:$0xff]
        %v269 = vld [vmem:[%s2 + $0x2c8] sm:$0xff]
        %v270 = vld [vmem:[%s2 + $0x2d0] sm:$0xff]
        %v271 = vld [vmem:[%s2 + $0x2d8] sm:$0xff]
        %v272 = vld [vmem:[%s2 + $0x2e0] sm:$0xff]
        %v273 = vld [vmem:[%s2 + $0x2e8] sm:$0xff]
        %v274 = vld [vmem:[%s2 + $0x2f0] sm:$0xff]
        %v275 = vld [vmem:[%s2 + $0x2f8] sm:$0xff]
        %v276 = vld [vmem:[%s2 + $0x300] sm:$0xff]
        %v277 = vld [vmem:[%s2 + $0x308] sm:$0xff]
        %v278 = vld [vmem:[%s2 + $0x310] sm:$0xff]
        %v279 = vld [vmem:[%s2 + $0x318] sm:$0xff]
        %v280 = vld [vmem:[%s2 + $0x320] sm:$0xff]
        %v281 = vld [vmem:[%s2 + $0x328] sm:$0xff]
        %v282 = vld [vmem:[%s2 + $0x330] sm:$0xff]
        %v283 = vld [vmem:[%s2 + $0x338] sm:$0xff]
        %v284 = vld [vmem:[%s2 + $0x340] sm:$0xff]
        %v285 = vld [vmem:[%s2 + $0x348] sm:$0xff]
        %v286 = vld [vmem:[%s2 + $0x350] sm:$0xff]
        %v287 = vld [vmem:[%s2 + $0x358] sm:$0xff]
        %v288 = vld [vmem:[%s2 + $0x360] sm:$0xff]
        %v289 = vld [vmem:[%s2 + $0x368] sm:$0xff]
        %v290 = vld [vmem:[%s2 + $0x370] sm:$0xff]
        %v291 = vld [vmem:[%s2 + $0x378] sm:$0xff]
        %v292 = vld [vmem:[%s2 + $0x380] sm:$0xff]
        %v293 = vld [vmem:[%s2 + $0x388] sm:$0xff]
        %v294 = vld [vmem:[%s2 + $0x390] sm:$0xff]
        %v295 = vld [vmem:[%s2 + $0x398] sm:$0xff]
        %v296 = vld [vmem:[%s2 + $0x3a0] sm:$0xff]
        %v297 = vld [vmem:[%s2 + $0x3a8] sm:$0xff]
        %v298 = vld [vmem:[%s2 + $0x3b0] sm:$0xff]
        %v299 = vld [vmem:[%s2 + $0x3b8] sm:$0xff]
        %v300 = vld [vmem:[%s2 + $0x3c0] sm:$0xff]
        %v301 = vld [vmem:[%s2 + $0x3c8] sm:$0xff]
        %v302 = vld [vmem:[%s2 + $0x3d0] sm:$0xff]
        %v303 = vld [vmem:[%s2 + $0x3d8] sm:$0xff]
        %v304 = vld [vmem:[%s2 + $0x3e0] sm:$0xff]
        %v305 = vld [vmem:[%s2 + $0x3e8] sm:$0xff]
        %v306 = vld [vmem:[%s2 + $0x3f0] sm:$0xff]
        %v307 = vld [vmem:[%s2 + $0x3f8] sm:$0xff]
        %v308 = vld [vmem:[%s2 + $0x400] sm:$0xff]
        %v309 = vld [vmem:[%s2 + $0x408] sm:$0xff]
        %v310 = vld [vmem:[%s2 + $0x410] sm:$0xff]
        %v311 = vld [vmem:[%s2 + $0x418] sm:$0xff]
        %v312 = vld [vmem:[%s2 + $0x420] sm:$0xff]
        %v313 = vld [vmem:[%s2 + $0x428] sm:$0xff]
        %v314 = vld [vmem:[%s2 + $0x430] sm:$0xff]
        %v315 = vld [vmem:[%s2 + $0x438] sm:$0xff]
        %v316 = vld [vmem:[%s2 + $0x440] sm:$0xff]
        %v317 = vld [vmem:[%s2 + $0x448] sm:$0xff]
        %v318 = vld [vmem:[%s2 + $0x450] sm:$0xff]
        %v319 = vld [vmem:[%s2 + $0x458] sm:$0xff]
        %v320 = vld [vmem:[%s2 + $0x460] sm:$0xff]
        %v321 = vld [vmem:[%s2 + $0x468] sm:$0xff]
        %v322 = vld [vmem:[%s2 + $0x470] sm:$0xff]
        %v323 = vld [vmem:[%s2 + $0x478] sm:$0xff]
        %v324 = vld [vmem:[%s2 + $0x480] sm:$0xff]
        %v325 = vld [vmem:[%s2 + $0x488] sm:$0xff]
        %v326 = vld [vmem:[%s2 + $0x490] sm:$0xff]
        %v327 = vld [vmem:[%s2 + $0x498] sm:$0xff]
        %v328 = vld [vmem:[%s2 + $0x4a0] sm:$0xff]
        %v329 = vld [vmem:[%s2 + $0x4a8] sm:$0xff]
        %v330 = vld [vmem:[%s2 + $0x4b0] sm:$0xff]
        %v331 = vld [vmem:[%s2 + $0x4b8] sm:$0xff]
        %v332 = vld [vmem:[%s2 + $0x4c0] sm:$0xff]
        %v333 = vld [vmem:[%s2 + $0x4c8] sm:$0xff]
        %v334 = vld [vmem:[%s2 + $0x4d0] sm:$0xff]
        %v335 = vld [vmem:[%s2 + $0x4d8] sm:$0xff]
        %v336 = vld [vmem:[%s2 + $0x4e0] sm:$0xff]
        %v337 = vld [vmem:[%s2 + $0x4e8] sm:$0xff]
        %v338 = vld [vmem:[%s2 + $0x4f0] sm:$0xff]
        %v339 = vld [vmem:[%s2 + $0x4f8] sm:$0xff]
        %v340 = vld [vmem:[%s2 + $0x500] sm:$0x7f]
        %v341 = vcvt.f32.s32.to.zero.pseudo %v169
        %v342 = vlaneseq
        %v343 = vand.u32 %v342, 127
        %344 = vset.pattern.permute.xlu0 0
        %345 = vperm.xlu0 %344, %v341
        %v346 = vpop.permute.xlu0 %345
        %vm347 = vcmp.eq.s32.totalorder %v343, %v346
        %v348 = vadd.s32 %v341, 5
        %349 = vset.pattern.permute.xlu0 1
        %350 = vperm.xlu0 %349, %v348
        %v351 = vpop.permute.xlu0 %350
        %vm352 = vcmp.eq.s32.totalorder %v343, %v351
        %vm353 = vmor %vm347, %vm352
        %v354 = vadd.s32 %v341, 12
        %355 = vset.pattern.permute.xlu0 2
        %356 = vperm.xlu0 %355, %v354
        %v357 = vpop.permute.xlu0 %356
        %vm358 = vcmp.eq.s32.totalorder %v343, %v357
        %vm359 = vmor %vm353, %vm358
        %v360 = vsel %vm359, 1, 0
        %v361 = vcvt.s32.f32 %v360
        %v362 = vld [vmem:[%s1] sm:$0xff]
        %v363 = vld [vmem:[%s1 + $0x8] sm:$0x7f]
        %vm364 = vcmask 121856
        %v366 = vsel %vm364, %v361, 0
        %vm368 = vcmask 1046528
        %v370 = vsel %vm368, %v363, 0
        %372 = vmatprep.subr.mxu0 0.0
        %373 = vmatpush1.msra.mxu0 %v362
        %374 = vmatprep.subr.mxu0 0.0
        %375 = vmatpush1.msra.mxu0 %v370
        %376 = vmatprep.subr.mxu0 0.0
        %377 = vmatpush1.msra.mxu0 0.0
        %378 = vmatprep.subr.mxu0 0.0
        %379 = vmatpush1.msra.mxu0 0.0
        %380 = vmatprep.subr.mxu0 0.0
        %381 = vmatpush1.msra.mxu0 0.0
        %382 = vmatprep.subr.mxu0 0.0
        %383 = vmatpush1.msra.mxu0 0.0
        %384 = vmatprep.subr.mxu0 0.0
        %385 = vmatpush1.msra.mxu0 0.0
        %386 = vmatprep.subr.mxu0 0.0
        %387 = vmatpush1.msra.mxu0 0.0
        %388 = vmatprep.subr.mxu0 0.0
        %389 = vmatpush1.msra.mxu0 0.0
        %390 = vmatprep.subr.mxu0 0.0
        %391 = vmatpush1.msra.mxu0 0.0
        %392 = vmatprep.subr.mxu0 0.0
        %393 = vmatpush1.msra.mxu0 0.0
        %394 = vmatprep.subr.mxu0 0.0
        %395 = vmatpush1.msra.mxu0 0.0
        %396 = vmatprep.subr.mxu0 0.0
        %397 = vmatpush1.msra.mxu0 0.0
        %398 = vmatprep.subr.mxu0 0.0
        %399 = vmatpush1.msra.mxu0 0.0
        %400 = vmatprep.subr.mxu0 0.0
        %401 = vmatpush1.msra.mxu0 0.0
        %402 = vmatprep.subr.mxu0 0.0
        %403 = vmatpush1.msra.mxu0 0.0
        %404 = vmatprep.subr.mxu0 0.0
        %405 = vmatpush1.msra.mxu0 0.0
        %406 = vmatprep.subr.mxu0 0.0
        %407 = vmatpush1.msra.mxu0 0.0
        %408 = vmatprep.subr.mxu0 0.0
        %409 = vmatpush1.msra.mxu0 0.0
        %410 = vmatprep.subr.mxu0 0.0
        %411 = vmatpush1.msra.mxu0 0.0
        %412 = vmatprep.subr.mxu0 0.0
        %413 = vmatpush1.msra.mxu0 0.0
        %414 = vmatprep.subr.mxu0 0.0
        %415 = vmatpush1.msra.mxu0 0.0
        %416 = vmatprep.subr.mxu0 0.0
        %417 = vmatpush1.msra.mxu0 0.0
        %418 = vmatprep.subr.mxu0 0.0
        %419 = vmatpush1.msra.mxu0 0.0
        %420 = vmatprep.subr.mxu0 0.0
        %421 = vmatpush1.msra.mxu0 0.0
        %422 = vmatprep.subr.mxu0 0.0
        %423 = vmatpush1.msra.mxu0 0.0
        %424 = vmatprep.subr.mxu0 0.0
        %425 = vmatpush1.msra.mxu0 0.0
        %426 = vmatprep.subr.mxu0 0.0
        %427 = vmatpush1.msra.mxu0 0.0
        %428 = vmatprep.subr.mxu0 0.0
        %429 = vmatpush1.msra.mxu0 0.0
        %430 = vmatprep.subr.mxu0 0.0
        %431 = vmatpush1.msra.mxu0 0.0
        %432 = vmatprep.subr.mxu0 0.0
        %433 = vmatpush1.msra.mxu0 0.0
        %434 = vmatprep.subr.mxu0 0.0
        %435 = vmatpush1.msra.mxu0 0.0
        %436 = vmatprep.mubr.f32.mxu0 0.0
        %437 = vmatmul.mubr.f32.gmra.mrb[0].mxu0 %v366
        %v438 = vpop.f32.mrb[0].mxu0
        %v439 = vadd.f32 0.0, %v438
        %v440 = vpop.f32.mrb[0].mxu0
        %441 = vdwg.mxu0
        %vm442 = vcmask 56320
        %v444 = vsel %vm442, %v179, 0
        %v447 = vsel %vm368, %v340, 0
        %449 = vmatprep.subr.mxu0 0.0
        %450 = vmatpush1.msra.mxu0 %v180
        %451 = vmatprep.subr.mxu0 0.0
        %452 = vmatpush1.msra.mxu0 %v181
        %453 = vmatprep.subr.mxu0 0.0
        %454 = vmatpush1.msra.mxu0 %v182
        %455 = vmatprep.subr.mxu0 0.0
        %456 = vmatpush1.msra.mxu0 %v183
        %457 = vmatprep.subr.mxu0 0.0
        %458 = vmatpush1.msra.mxu0 %v184
        %459 = vmatprep.subr.mxu0 0.0
        %460 = vmatpush1.msra.mxu0 %v185
        %461 = vmatprep.subr.mxu0 0.0
        %462 = vmatpush1.msra.mxu0 %v186
        %463 = vmatprep.subr.mxu0 0.0
        %464 = vmatpush1.msra.mxu0 %v187
        %465 = vmatprep.subr.mxu0 0.0
        %466 = vmatpush1.msra.mxu0 %v188
        %467 = vmatprep.subr.mxu0 0.0
        %468 = vmatpush1.msra.mxu0 %v189
        %469 = vmatprep.subr.mxu0 0.0
        %470 = vmatpush1.msra.mxu0 %v190
        %471 = vmatprep.subr.mxu0 0.0
        %472 = vmatpush1.msra.mxu0 %v191
        %473 = vmatprep.subr.mxu0 0.0
        %474 = vmatpush1.msra.mxu0 %v192
        %475 = vmatprep.subr.mxu0 0.0
        %476 = vmatpush1.msra.mxu0 %v193
        %477 = vmatprep.subr.mxu0 0.0
        %478 = vmatpush1.msra.mxu0 %v194
        %479 = vmatprep.subr.mxu0 0.0
        %480 = vmatpush1.msra.mxu0 %v195
        %481 = vmatprep.subr.mxu0 0.0
        %482 = vmatpush1.msra.mxu0 %v196
        %483 = vmatprep.subr.mxu0 0.0
        %484 = vmatpush1.msra.mxu0 %v197
        %485 = vmatprep.subr.mxu0 0.0
        %486 = vmatpush1.msra.mxu0 %v198
        %487 = vmatprep.subr.mxu0 0.0
        %488 = vmatpush1.msra.mxu0 %v199
        %489 = vmatprep.subr.mxu0 0.0
        %490 = vmatpush1.msra.mxu0 %v200
        %491 = vmatprep.subr.mxu0 0.0
        %492 = vmatpush1.msra.mxu0 %v201
        %493 = vmatprep.subr.mxu0 0.0
        %494 = vmatpush1.msra.mxu0 %v202
        %495 = vmatprep.subr.mxu0 0.0
        %496 = vmatpush1.msra.mxu0 %v203
        %497 = vmatprep.subr.mxu0 0.0
        %498 = vmatpush1.msra.mxu0 %v204
        %499 = vmatprep.subr.mxu0 0.0
        %500 = vmatpush1.msra.mxu0 %v205
        %501 = vmatprep.subr.mxu0 0.0
        %502 = vmatpush1.msra.mxu0 %v206
        %503 = vmatprep.subr.mxu0 0.0
        %504 = vmatpush1.msra.mxu0 %v207
        %505 = vmatprep.subr.mxu0 0.0
        %506 = vmatpush1.msra.mxu0 %v208
        %507 = vmatprep.subr.mxu0 0.0
        %508 = vmatpush1.msra.mxu0 %v209
        %509 = vmatprep.subr.mxu0 0.0
        %510 = vmatpush1.msra.mxu0 %v210
        %511 = vmatprep.subr.mxu0 0.0
        %512 = vmatpush1.msra.mxu0 %v211
        %513 = vmatprep.mubr.f32.mxu0 %v170
        %514 = vmatmul.mubr.f32.gmra.mrb[0].mxu0 %v169
        %v515 = vpop.f32.mrb[0].mxu0
        %v516 = vadd.f32 %v439, %v515
        %v517 = vpop.f32.mrb[0].mxu0
        %518 = vdwg.mxu0
        %519 = vmatprep.subr.mxu0 0.0
        %520 = vmatpush1.msra.mxu0 %v212
        %521 = vmatprep.subr.mxu0 0.0
        %522 = vmatpush1.msra.mxu0 %v213
        %523 = vmatprep.subr.mxu0 0.0
        %524 = vmatpush1.msra.mxu0 %v214
        %525 = vmatprep.subr.mxu0 0.0
        %526 = vmatpush1.msra.mxu0 %v215
        %527 = vmatprep.subr.mxu0 0.0
        %528 = vmatpush1.msra.mxu0 %v216
        %529 = vmatprep.subr.mxu0 0.0
        %530 = vmatpush1.msra.mxu0 %v217
        %531 = vmatprep.subr.mxu0 0.0
        %532 = vmatpush1.msra.mxu0 %v218
        %533 = vmatprep.subr.mxu0 0.0
        %534 = vmatpush1.msra.mxu0 %v219
        %535 = vmatprep.subr.mxu0 0.0
        %536 = vmatpush1.msra.mxu0 %v220
        %537 = vmatprep.subr.mxu0 0.0
        %538 = vmatpush1.msra.mxu0 %v221
        %539 = vmatprep.subr.mxu0 0.0
        %540 = vmatpush1.msra.mxu0 %v222
        %541 = vmatprep.subr.mxu0 0.0
        %542 = vmatpush1.msra.mxu0 %v223
        %543 = vmatprep.subr.mxu0 0.0
        %544 = vmatpush1.msra.mxu0 %v224
        %545 = vmatprep.subr.mxu0 0.0
        %546 = vmatpush1.msra.mxu0 %v225
        %547 = vmatprep.subr.mxu0 0.0
        %548 = vmatpush1.msra.mxu0 %v226
        %549 = vmatprep.subr.mxu0 0.0
        %550 = vmatpush1.msra.mxu0 %v227
        %551 = vmatprep.subr.mxu0 0.0
        %552 = vmatpush1.msra.mxu0 %v228
        %553 = vmatprep.subr.mxu0 0.0
        %554 = vmatpush1.msra.mxu0 %v229
        %555 = vmatprep.subr.mxu0 0.0
        %556 = vmatpush1.msra.mxu0 %v230
        %557 = vmatprep.subr.mxu0 0.0
        %558 = vmatpush1.msra.mxu0 %v231
        %559 = vmatprep.subr.mxu0 0.0
        %560 = vmatpush1.msra.mxu0 %v232
        %561 = vmatprep.subr.mxu0 0.0
        %562 = vmatpush1.msra.mxu0 %v233
        %563 = vmatprep.subr.mxu0 0.0
        %564 = vmatpush1.msra.mxu0 %v234
        %565 = vmatprep.subr.mxu0 0.0
        %566 = vmatpush1.msra.mxu0 %v235
        %567 = vmatprep.subr.mxu0 0.0
        %568 = vmatpush1.msra.mxu0 %v236
        %569 = vmatprep.subr.mxu0 0.0
        %570 = vmatpush1.msra.mxu0 %v237
        %571 = vmatprep.subr.mxu0 0.0
        %572 = vmatpush1.msra.mxu0 %v238
        %573 = vmatprep.subr.mxu0 0.0
        %574 = vmatpush1.msra.mxu0 %v239
        %575 = vmatprep.subr.mxu0 0.0
        %576 = vmatpush1.msra.mxu0 %v240
        %577 = vmatprep.subr.mxu0 0.0
        %578 = vmatpush1.msra.mxu0 %v241
        %579 = vmatprep.subr.mxu0 0.0
        %580 = vmatpush1.msra.mxu0 %v242
        %581 = vmatprep.subr.mxu0 0.0
        %582 = vmatpush1.msra.mxu0 %v243
        %583 = vmatprep.mubr.f32.mxu0 %v172
        %584 = vmatmul.mubr.f32.gmra.mrb[0].mxu0 %v171
        %v585 = vpop.f32.mrb[0].mxu0
        %v586 = vadd.f32 %v516, %v585
        %v587 = vpop.f32.mrb[0].mxu0
        %588 = vdwg.mxu0
        %589 = vmatprep.subr.mxu0 0.0
        %590 = vmatpush1.msra.mxu0 %v244
        %591 = vmatprep.subr.mxu0 0.0
        %592 = vmatpush1.msra.mxu0 %v245
        %593 = vmatprep.subr.mxu0 0.0
        %594 = vmatpush1.msra.mxu0 %v246
        %595 = vmatprep.subr.mxu0 0.0
        %596 = vmatpush1.msra.mxu0 %v247
        %597 = vmatprep.subr.mxu0 0.0
        %598 = vmatpush1.msra.mxu0 %v248
        %599 = vmatprep.subr.mxu0 0.0
        %600 = vmatpush1.msra.mxu0 %v249
        %601 = vmatprep.subr.mxu0 0.0
        %602 = vmatpush1.msra.mxu0 %v250
        %603 = vmatprep.subr.mxu0 0.0
        %604 = vmatpush1.msra.mxu0 %v251
        %605 = vmatprep.subr.mxu0 0.0
        %606 = vmatpush1.msra.mxu0 %v252
        %607 = vmatprep.subr.mxu0 0.0
        %608 = vmatpush1.msra.mxu0 %v253
        %609 = vmatprep.subr.mxu0 0.0
        %610 = vmatpush1.msra.mxu0 %v254
        %611 = vmatprep.subr.mxu0 0.0
        %612 = vmatpush1.msra.mxu0 %v255
        %613 = vmatprep.subr.mxu0 0.0
        %614 = vmatpush1.msra.mxu0 %v256
        %615 = vmatprep.subr.mxu0 0.0
        %616 = vmatpush1.msra.mxu0 %v257
        %617 = vmatprep.subr.mxu0 0.0
        %618 = vmatpush1.msra.mxu0 %v258
        %619 = vmatprep.subr.mxu0 0.0
        %620 = vmatpush1.msra.mxu0 %v259
        %621 = vmatprep.subr.mxu0 0.0
        %622 = vmatpush1.msra.mxu0 %v260
        %623 = vmatprep.subr.mxu0 0.0
        %624 = vmatpush1.msra.mxu0 %v261
        %625 = vmatprep.subr.mxu0 0.0
        %626 = vmatpush1.msra.mxu0 %v262
        %627 = vmatprep.subr.mxu0 0.0
        %628 = vmatpush1.msra.mxu0 %v263
        %629 = vmatprep.subr.mxu0 0.0
        %630 = vmatpush1.msra.mxu0 %v264
        %631 = vmatprep.subr.mxu0 0.0
        %632 = vmatpush1.msra.mxu0 %v265
        %633 = vmatprep.subr.mxu0 0.0
        %634 = vmatpush1.msra.mxu0 %v266
        %635 = vmatprep.subr.mxu0 0.0
        %636 = vmatpush1.msra.mxu0 %v267
        %637 = vmatprep.subr.mxu0 0.0
        %638 = vmatpush1.msra.mxu0 %v268
        %639 = vmatprep.subr.mxu0 0.0
        %640 = vmatpush1.msra.mxu0 %v269
        %641 = vmatprep.subr.mxu0 0.0
        %642 = vmatpush1.msra.mxu0 %v270
        %643 = vmatprep.subr.mxu0 0.0
        %644 = vmatpush1.msra.mxu0 %v271
        %645 = vmatprep.subr.mxu0 0.0
        %646 = vmatpush1.msra.mxu0 %v272
        %647 = vmatprep.subr.mxu0 0.0
        %648 = vmatpush1.msra.mxu0 %v273
        %649 = vmatprep.subr.mxu0 0.0
        %650 = vmatpush1.msra.mxu0 %v274
        %651 = vmatprep.subr.mxu0 0.0
        %652 = vmatpush1.msra.mxu0 %v275
        %653 = vmatprep.mubr.f32.mxu0 %v174
        %654 = vmatmul.mubr.f32.gmra.mrb[0].mxu0 %v173
        %v655 = vpop.f32.mrb[0].mxu0
        %v656 = vadd.f32 %v586, %v655
        %v657 = vpop.f32.mrb[0].mxu0
        %658 = vdwg.mxu0
        %659 = vmatprep.subr.mxu0 0.0
        %660 = vmatpush1.msra.mxu0 %v276
        %661 = vmatprep.subr.mxu0 0.0
        %662 = vmatpush1.msra.mxu0 %v277
        %663 = vmatprep.subr.mxu0 0.0
        %664 = vmatpush1.msra.mxu0 %v278
        %665 = vmatprep.subr.mxu0 0.0
        %666 = vmatpush1.msra.mxu0 %v279
        %667 = vmatprep.subr.mxu0 0.0
        %668 = vmatpush1.msra.mxu0 %v280
        %669 = vmatprep.subr.mxu0 0.0
        %670 = vmatpush1.msra.mxu0 %v281
        %671 = vmatprep.subr.mxu0 0.0
        %672 = vmatpush1.msra.mxu0 %v282
        %673 = vmatprep.subr.mxu0 0.0
        %674 = vmatpush1.msra.mxu0 %v283
        %675 = vmatprep.subr.mxu0 0.0
        %676 = vmatpush1.msra.mxu0 %v284
        %677 = vmatprep.subr.mxu0 0.0
        %678 = vmatpush1.msra.mxu0 %v285
        %679 = vmatprep.subr.mxu0 0.0
        %680 = vmatpush1.msra.mxu0 %v286
        %681 = vmatprep.subr.mxu0 0.0
        %682 = vmatpush1.msra.mxu0 %v287
        %683 = vmatprep.subr.mxu0 0.0
        %684 = vmatpush1.msra.mxu0 %v288
        %685 = vmatprep.subr.mxu0 0.0
        %686 = vmatpush1.msra.mxu0 %v289
        %687 = vmatprep.subr.mxu0 0.0
        %688 = vmatpush1.msra.mxu0 %v290
        %689 = vmatprep.subr.mxu0 0.0
        %690 = vmatpush1.msra.mxu0 %v291
        %691 = vmatprep.subr.mxu0 0.0
        %692 = vmatpush1.msra.mxu0 %v292
        %693 = vmatprep.subr.mxu0 0.0
        %694 = vmatpush1.msra.mxu0 %v293
        %695 = vmatprep.subr.mxu0 0.0
        %696 = vmatpush1.msra.mxu0 %v294
        %697 = vmatprep.subr.mxu0 0.0
        %698 = vmatpush1.msra.mxu0 %v295
        %699 = vmatprep.subr.mxu0 0.0
        %700 = vmatpush1.msra.mxu0 %v296
        %701 = vmatprep.subr.mxu0 0.0
        %702 = vmatpush1.msra.mxu0 %v297
        %703 = vmatprep.subr.mxu0 0.0
        %704 = vmatpush1.msra.mxu0 %v298
        %705 = vmatprep.subr.mxu0 0.0
        %706 = vmatpush1.msra.mxu0 %v299
        %707 = vmatprep.subr.mxu0 0.0
        %708 = vmatpush1.msra.mxu0 %v300
        %709 = vmatprep.subr.mxu0 0.0
        %710 = vmatpush1.msra.mxu0 %v301
        %711 = vmatprep.subr.mxu0 0.0
        %712 = vmatpush1.msra.mxu0 %v302
        %713 = vmatprep.subr.mxu0 0.0
        %714 = vmatpush1.msra.mxu0 %v303
        %715 = vmatprep.subr.mxu0 0.0
        %716 = vmatpush1.msra.mxu0 %v304
        %717 = vmatprep.subr.mxu0 0.0
        %718 = vmatpush1.msra.mxu0 %v305
        %719 = vmatprep.subr.mxu0 0.0
        %720 = vmatpush1.msra.mxu0 %v306
        %721 = vmatprep.subr.mxu0 0.0
        %722 = vmatpush1.msra.mxu0 %v307
        %723 = vmatprep.mubr.f32.mxu0 %v176
        %724 = vmatmul.mubr.f32.gmra.mrb[0].mxu0 %v175
        %v725 = vpop.f32.mrb[0].mxu0
        %v726 = vadd.f32 %v656, %v725
        %v727 = vpop.f32.mrb[0].mxu0
        %728 = vdwg.mxu0
        %729 = vmatprep.subr.mxu0 0.0
        %730 = vmatpush1.msra.mxu0 %v308
        %731 = vmatprep.subr.mxu0 0.0
        %732 = vmatpush1.msra.mxu0 %v309
        %733 = vmatprep.subr.mxu0 0.0
        %734 = vmatpush1.msra.mxu0 %v310
        %735 = vmatprep.subr.mxu0 0.0
        %736 = vmatpush1.msra.mxu0 %v311
        %737 = vmatprep.subr.mxu0 0.0
        %738 = vmatpush1.msra.mxu0 %v312
        %739 = vmatprep.subr.mxu0 0.0
        %740 = vmatpush1.msra.mxu0 %v313
        %741 = vmatprep.subr.mxu0 0.0
        %742 = vmatpush1.msra.mxu0 %v314
        %743 = vmatprep.subr.mxu0 0.0
        %744 = vmatpush1.msra.mxu0 %v315
        %745 = vmatprep.subr.mxu0 0.0
        %746 = vmatpush1.msra.mxu0 %v316
        %747 = vmatprep.subr.mxu0 0.0
        %748 = vmatpush1.msra.mxu0 %v317
        %749 = vmatprep.subr.mxu0 0.0
        %750 = vmatpush1.msra.mxu0 %v318
        %751 = vmatprep.subr.mxu0 0.0
        %752 = vmatpush1.msra.mxu0 %v319
        %753 = vmatprep.subr.mxu0 0.0
        %754 = vmatpush1.msra.mxu0 %v320
        %755 = vmatprep.subr.mxu0 0.0
        %756 = vmatpush1.msra.mxu0 %v321
        %757 = vmatprep.subr.mxu0 0.0
        %758 = vmatpush1.msra.mxu0 %v322
        %759 = vmatprep.subr.mxu0 0.0
        %760 = vmatpush1.msra.mxu0 %v323
        %761 = vmatprep.subr.mxu0 0.0
        %762 = vmatpush1.msra.mxu0 %v324
        %763 = vmatprep.subr.mxu0 0.0
        %764 = vmatpush1.msra.mxu0 %v325
        %765 = vmatprep.subr.mxu0 0.0
        %766 = vmatpush1.msra.mxu0 %v326
        %767 = vmatprep.subr.mxu0 0.0
        %768 = vmatpush1.msra.mxu0 %v327
        %769 = vmatprep.subr.mxu0 0.0
        %770 = vmatpush1.msra.mxu0 %v328
        %771 = vmatprep.subr.mxu0 0.0
        %772 = vmatpush1.msra.mxu0 %v329
        %773 = vmatprep.subr.mxu0 0.0
        %774 = vmatpush1.msra.mxu0 %v330
        %775 = vmatprep.subr.mxu0 0.0
        %776 = vmatpush1.msra.mxu0 %v331
        %777 = vmatprep.subr.mxu0 0.0
        %778 = vmatpush1.msra.mxu0 %v332
        %779 = vmatprep.subr.mxu0 0.0
        %780 = vmatpush1.msra.mxu0 %v333
        %781 = vmatprep.subr.mxu0 0.0
        %782 = vmatpush1.msra.mxu0 %v334
        %783 = vmatprep.subr.mxu0 0.0
        %784 = vmatpush1.msra.mxu0 %v335
        %785 = vmatprep.subr.mxu0 0.0
        %786 = vmatpush1.msra.mxu0 %v336
        %787 = vmatprep.subr.mxu0 0.0
        %788 = vmatpush1.msra.mxu0 %v337
        %789 = vmatprep.subr.mxu0 0.0
        %790 = vmatpush1.msra.mxu0 %v338
        %791 = vmatprep.subr.mxu0 0.0
        %792 = vmatpush1.msra.mxu0 %v339
        %793 = vmatprep.mubr.f32.mxu0 %v178
        %794 = vmatmul.mubr.f32.gmra.mrb[0].mxu0 %v177
        %v795 = vpop.f32.mrb[0].mxu0
        %v796 = vadd.f32 %v726, %v795
        %v797 = vpop.f32.mrb[0].mxu0
        %798 = vdwg.mxu0
        %799 = vmatprep.subr.mxu0 0.0
        %800 = vmatpush1.msra.mxu0 %v447
        %801 = vmatprep.subr.mxu0 0.0
        %802 = vmatpush1.msra.mxu0 0.0
        %803 = vmatprep.subr.mxu0 0.0
        %804 = vmatpush1.msra.mxu0 0.0
        %805 = vmatprep.subr.mxu0 0.0
        %806 = vmatpush1.msra.mxu0 0.0
        %807 = vmatprep.subr.mxu0 0.0
        %808 = vmatpush1.msra.mxu0 0.0
        %809 = vmatprep.subr.mxu0 0.0
        %810 = vmatpush1.msra.mxu0 0.0
        %811 = vmatprep.subr.mxu0 0.0
        %812 = vmatpush1.msra.mxu0 0.0
        %813 = vmatprep.subr.mxu0 0.0
        %814 = vmatpush1.msra.mxu0 0.0
        %815 = vmatprep.subr.mxu0 0.0
        %816 = vmatpush1.msra.mxu0 0.0
        %817 = vmatprep.subr.mxu0 0.0
        %818 = vmatpush1.msra.mxu0 0.0
        %819 = vmatprep.subr.mxu0 0.0
        %820 = vmatpush1.msra.mxu0 0.0
        %821 = vmatprep.subr.mxu0 0.0
        %822 = vmatpush1.msra.mxu0 0.0
        %823 = vmatprep.subr.mxu0 0.0
        %824 = vmatpush1.msra.mxu0 0.0
        %825 = vmatprep.subr.mxu0 0.0
        %826 = vmatpush1.msra.mxu0 0.0
        %827 = vmatprep.subr.mxu0 0.0
        %828 = vmatpush1.msra.mxu0 0.0
        %829 = vmatprep.subr.mxu0 0.0
        %830 = vmatpush1.msra.mxu0 0.0
        %831 = vmatprep.subr.mxu0 0.0
        %832 = vmatpush1.msra.mxu0 0.0
        %833 = vmatprep.subr.mxu0 0.0
        %834 = vmatpush1.msra.mxu0 0.0
        %835 = vmatprep.subr.mxu0 0.0
        %836 = vmatpush1.msra.mxu0 0.0
        %837 = vmatprep.subr.mxu0 0.0
        %838 = vmatpush1.msra.mxu0 0.0
        %839 = vmatprep.subr.mxu0 0.0
        %840 = vmatpush1.msra.mxu0 0.0
        %841 = vmatprep.subr.mxu0 0.0
        %842 = vmatpush1.msra.mxu0 0.0
        %843 = vmatprep.subr.mxu0 0.0
        %844 = vmatpush1.msra.mxu0 0.0
        %845 = vmatprep.subr.mxu0 0.0
        %846 = vmatpush1.msra.mxu0 0.0
        %847 = vmatprep.subr.mxu0 0.0
        %848 = vmatpush1.msra.mxu0 0.0
        %849 = vmatprep.subr.mxu0 0.0
        %850 = vmatpush1.msra.mxu0 0.0
        %851 = vmatprep.subr.mxu0 0.0
        %852 = vmatpush1.msra.mxu0 0.0
        %853 = vmatprep.subr.mxu0 0.0
        %854 = vmatpush1.msra.mxu0 0.0
        %855 = vmatprep.subr.mxu0 0.0
        %856 = vmatpush1.msra.mxu0 0.0
        %857 = vmatprep.subr.mxu0 0.0
        %858 = vmatpush1.msra.mxu0 0.0
        %859 = vmatprep.subr.mxu0 0.0
        %860 = vmatpush1.msra.mxu0 0.0
        %861 = vmatprep.subr.mxu0 0.0
        %862 = vmatpush1.msra.mxu0 0.0
        %863 = vmatprep.mubr.f32.mxu0 0.0
        %864 = vmatmul.mubr.f32.gmra.mrb[0].mxu0 %v444
        %v865 = vpop.f32.mrb[0].mxu0
        %v866 = vadd.f32 %v796, %v865
        %v867 = vpop.f32.mrb[0].mxu0
        %868 = vdwg.mxu0
        %vm869 = vcmask 261120
        %870 = vst.msk [vmem:[%s163] sm:$0xff] %vm869, %v866
        %s871 = sand.u32 %s93, 1
        %s872 = scalar_lea.sflag [#allocation3], %s871
        %s873 = sand.u32 %s93, 1
        %s874 = smul.addr %s873, 8
        %s875 = scalar_lea.vmem [#allocation2], %s874
        // Predicated region
        $region33: #{tpu_custom_call.1} parent=31 // pred_check
          %p876 = pneg %p103
        $region34: #{tpu_custom_call.1} parent=31 // pred_check_branch
          %878 = sbr.rel (%p876) target = $region36
        $region35: #{tpu_custom_call.1} parent=31 // pred_region
          %s880 = ssub.s32 128, 128
          %881 = vsyncadd %s872, %s880
          %s882 = smul.addr %s17, 128
          %s883 = scalar_lea.hbm %s3, %s882
          %s885 = sshll.u32 %s875, 4
          %s886 = int_to_ptr.vmem [resolvable:$true] %s885
          %888 = dma.vmem_to_hbm [thread:$0]  %s886, 128, %s883, %s872
        $region36: #{tpu_custom_call.1} parent=31 // pred_fallthru
          _
      $region32: #{tpu_custom_call.1} parent=5 // pred_fallthru
        _
      %p889 = scmp.le.s32.totalorder 2, %s12
      // Predicated region
      $region37: #{tpu_custom_call.1} parent=5 // pred_check
        %p890 = pneg %p889
      $region38: #{tpu_custom_call.1} parent=5 // pred_check_branch
        %892 = sbr.rel (%p890) target = $region40
      $region39: #{tpu_custom_call.1} parent=5 // pred_region
        %s893 = ssub.s32 %s12, 2
        // Predicated region
        $region41: #{tpu_custom_call.1} parent=39 // pred_check
          %p894 = pneg %p109
        $region42: #{tpu_custom_call.1} parent=39 // pred_check_branch
          %896 = sbr.rel (%p894) target = $region44
        $region43: #{tpu_custom_call.1} parent=39 // pred_region
          %s897 = sand.u32 %s94, 1
          %s898 = scalar_lea.sflag [#allocation3], %s897
          %s899 = sand.u32 %s94, 1
          %s900 = smul.addr %s899, 8
          %s901 = scalar_lea.vmem [#allocation2], %s900
          %902 = dma.done %s898, 128
        $region44: #{tpu_custom_call.1} parent=39 // pred_fallthru
          _
      $region40: #{tpu_custom_call.1} parent=5 // pred_fallthru
        _
    $region6: #{tpu_custom_call.1} parent=1 // loop_footer
      %s16 = sadd.s32 1, %s12
    $region7: #{tpu_custom_call.1} parent=1 // loop_footer_branch
      %11 = sbr.rel target = $region3
    $region8: #{tpu_custom_call.1} parent=1 // loop_exit
      _
    %903 = vsyncpa [#allocation3], 1
    %s904 = scalar_lea.sflag [#allocation3], 1
    %905 = vsyncpa %s904, 1

</llo_original>
